<compile_context>
chip_gen: v6e
topology: v6e:2x2x1
jax: 0.10.0
libtpu: 0.0.40
codegen_flags: <defaults>
</compile_context>

<pallas_src>
import math

import jax
import jax.numpy as jnp
from jax.experimental import pallas as pl
from jax.experimental.pallas import tpu as pltpu

HIDDEN = 128  # hard-coded in the PyTorch module


def _round_up(x, m):
    return (x + m - 1) // m * m


def policy_kernel(x_ref, w1_ref, b1_ref, wh_ref, bh_ref, logits_ref, probs_ref):
    # hidden layer: Linear(obs,128) + ReLU, f32 MXU accumulation
    h = jnp.dot(x_ref[...], w1_ref[...], preferred_element_type=jnp.float32) + b1_ref[...]
    h = jnp.maximum(h, 0.0)

    # lane-padded action head (padded cols: zero weights, -1e30 bias)
    logits = jnp.dot(h, wh_ref[...], preferred_element_type=jnp.float32) + bh_ref[...]
    logits_ref[...] = logits.astype(logits_ref.dtype)

    # numerically-stable softmax; padded lanes -> exp(-1e30 - m) == 0.
    # Exact division (not approx reciprocal) so probs are exactly normalized in f32;
    # only the final cast (e.g. bf16) perturbs them.
    m = jnp.max(logits, axis=-1, keepdims=True)
    e = jnp.exp(logits - m)
    denom = jnp.sum(e, axis=-1, keepdims=True)
    probs_ref[...] = (e / denom).astype(probs_ref.dtype)


def pack_params(w1, b1, w2, b2):
    """Weights in [in, out] layout (transpose of torch Linear). Pads head to 128 lanes.

    One-time setup cost; no per-call padding of the state/W1 obs dimension is needed
    (blocks equal the full array along obs, so the (8,128) constraint is satisfied).
    """
    h = w1.shape[1]
    n_actions = w2.shape[1]
    hp = max(128, _round_up(n_actions, 128))        # do NOT widen further (mem-bound kernel)
    w2p = jnp.zeros((h, hp), jnp.float32).at[:, :n_actions].set(w2)
    b2p = jnp.full((1, hp), -1e30, jnp.float32).at[:, :n_actions].set(b2.reshape(1, -1))
    # TODO(synk): on v6e/v7x the weights could be stored bf16 (cast at the matmul boundary)
    # to halve resident VMEM; skipped here — the kernel is output-writeback bound.
    return (w1.astype(jnp.float32), b1.reshape(1, -1).astype(jnp.float32), w2p, b2p)


def policy_net_forward(state, packed, n_actions, *, block_b=2048,
                       probs_dtype=jnp.bfloat16):
    """state: [B, obs] f32. Returns (logits [B, n_actions] f32, probs [B, n_actions])."""
    w1, b1, w2p, b2p = packed
    B, obs = state.shape
    H = w1.shape[1]
    HP = w2p.shape[1]

    # batch tiling: one (tb, obs) block per grid step; weights resident via constant index_map.
    tb = min(block_b, _round_up(B, 8))
    # v7x megacore: keep >= 2 grid steps for large batches so the "parallel" axis shards
    # across both TensorCores instead of collapsing onto one.
    if B >= 2048 and pl.cdiv(B, tb) < 2:
        tb = _round_up(pl.cdiv(B, 2), 8)
    Bp = _round_up(B, tb)
    if Bp != B:
        # only the ragged tail tile is padded (< tb rows); choose block_b dividing B to
        # avoid this copy entirely for large RL batches.
        state = jnp.pad(state, ((0, Bp - B), (0, 0)))

    # explicit VMEM budget: double-buffered in/out slabs + f32 temporaries + resident weights
    probs_isz = jnp.dtype(probs_dtype).itemsize
    weight_bytes = (obs * H + H + H * HP + HP) * 4
    per_row = (2 * obs * 4          # double-buffered state tile
               + 2 * HP * 4         # double-buffered f32 logits slab
               + 2 * HP * probs_isz # double-buffered probs slab
               + 3 * HP * 4)        # h / logits / e f32 temporaries
    vmem_limit = int(weight_bytes + tb * per_row + (2 << 20))   # 2 MiB headroom
    vmem_limit = max(16 << 20, min(vmem_limit, 64 << 20))       # fits v5e/v6e/v7x

    cost = pl.CostEstimate(
        flops=int(2 * B * (obs * H + H * HP)),
        transcendentals=int(B * HP),
        bytes_accessed=int(B * (obs * 4 + HP * 4 + HP * probs_isz) + weight_bytes))

    logits_pad, probs_pad = pl.pallas_call(
        policy_kernel,
        out_shape=(jax.ShapeDtypeStruct((Bp, HP), jnp.float32),
                   jax.ShapeDtypeStruct((Bp, HP), probs_dtype)),
        grid_spec=pltpu.PrefetchScalarGridSpec(
            num_scalar_prefetch=0,
            grid=(Bp // tb,),
            in_specs=[
                pl.BlockSpec((tb, obs), lambda i: (i, 0)),   # state tile (obs = full width)
                pl.BlockSpec((obs, H), lambda i: (0, 0)),    # W1 (resident)
                pl.BlockSpec((1, H), lambda i: (0, 0)),      # b1
                pl.BlockSpec((H, HP), lambda i: (0, 0)),     # padded head weight
                pl.BlockSpec((1, HP), lambda i: (0, 0)),     # padded head bias
            ],
            out_specs=(
                pl.BlockSpec((tb, HP), lambda i: (i, 0)),    # lane-dense f32 logits slab
                pl.BlockSpec((tb, HP), lambda i: (i, 0)),    # lane-dense probs slab
            ),
        ),
        compiler_params=pltpu.CompilerParams(
            dimension_semantics=("parallel",),
            vmem_limit_bytes=vmem_limit),
        cost_estimate=cost,
    )(state, w1, b1, w2p, b2p)

    # NOTE: consumers that can operate on the padded [B,128] slabs directly (padded probs
    # are exactly 0, padded logits -1e30, rows >= B are garbage) should skip these slices
    # to save two extra XLA passes over the dominant output stream.
    return logits_pad[:B, :n_actions], probs_pad[:B, :n_actions]


def init_params(key, obs_size, n_actions, hidden=HIDDEN):
    """Deterministic init mimicking PyTorch nn.Linear default (U[-1/sqrt(fan_in), +])."""
    ks = jax.random.split(key, 4)

    def linear(kw, kb, fan_in, fan_out):
        bound = 1.0 / math.sqrt(fan_in)
        w = jax.random.uniform(kw, (fan_in, fan_out), jnp.float32, -bound, bound)
        b = jax.random.uniform(kb, (fan_out,), jnp.float32, -bound, bound)
        return w, b

    w1, b1 = linear(ks[0], ks[1], obs_size, hidden)
    w2, b2 = linear(ks[2], ks[3], hidden, n_actions)
    return w1, b1, w2, b2


if __name__ == "__main__":
    key = jax.random.PRNGKey(0)
    k_state, k_params = jax.random.split(key)

    B, obs_size, n_actions = 8, 16, 4
    state = jax.random.normal(k_state, (B, obs_size), jnp.float32)
    w1, b1, w2, b2 = init_params(k_params, obs_size, n_actions)
    packed = pack_params(w1, b1, w2, b2)

    logits, probs = policy_net_forward(state, packed, n_actions)
    logits, probs = jax.block_until_ready((logits, probs))

    # pure-JAX reference (unpadded params, highest matmul precision)
    hp = jax.lax.Precision.HIGHEST
    h_ref = jnp.maximum(jnp.dot(state, w1, precision=hp) + b1, 0.0)
    logits_ref = jnp.dot(h_ref, w2, precision=hp) + b2
    probs_ref = jax.nn.softmax(logits_ref, axis=-1)

    probs_f32 = probs.astype(jnp.float32)
    assert logits.shape == (B, n_actions) and probs.shape == (B, n_actions)
    assert jnp.allclose(logits, logits_ref, atol=5e-3), "logits mismatch"
    # probs are exactly normalized in f32 inside the kernel; tolerance covers the bf16 cast.
    assert jnp.allclose(probs_f32, probs_ref, atol=2e-2), "probs mismatch"
    assert jnp.allclose(jnp.sum(probs_f32, axis=-1), 1.0, atol=2e-2), "probs not normalized"

    # TODO(synk): torch.distributions.Categorical is a host-side wrapper around `probs`;
    # no on-device equivalent beyond emitting the probabilities themselves.
    print("KERNEL_OK")
</pallas_src>

<mosaic_0001>
module attributes {stable_mosaic.version = 11 : i64} {
  func.func @policy_kernel(%arg0: i32, %arg1: memref<8x16xf32, #tpu.memory_space<vmem>>, %arg2: memref<16x128xf32, #tpu.memory_space<vmem>>, %arg3: memref<1x128xf32, #tpu.memory_space<vmem>>, %arg4: memref<128x128xf32, #tpu.memory_space<vmem>>, %arg5: memref<1x128xf32, #tpu.memory_space<vmem>>, %arg6: memref<8x128xf32, #tpu.memory_space<vmem>>, %arg7: memref<8x128xbf16, #tpu.memory_space<vmem>>) attributes {dimension_semantics = [#tpu.dimension_semantics<parallel>], iteration_bounds = array<i64: 1>, scalar_prefetch = 0 : i64, scratch_operands = 0 : i64, tpu.core_type = #tpu.core_type<tc>, window_params = [{transform_indices = @transform_0, window_bounds = array<i64: 8, 16>}, {pipeline_mode = #tpu.pipeline_mode<synchronous>, transform_indices = @transform_1, window_bounds = array<i64: 16, 128>}, {pipeline_mode = #tpu.pipeline_mode<synchronous>, transform_indices = @transform_2, window_bounds = array<i64: 1, 128>}, {pipeline_mode = #tpu.pipeline_mode<synchronous>, transform_indices = @transform_3, window_bounds = array<i64: 128, 128>}, {pipeline_mode = #tpu.pipeline_mode<synchronous>, transform_indices = @transform_4, window_bounds = array<i64: 1, 128>}, {transform_indices = @transform_5, window_bounds = array<i64: 8, 128>}, {transform_indices = @transform_6, window_bounds = array<i64: 8, 128>}]} {
    %c0 = arith.constant 0 : index
    %c0_0 = arith.constant 0 : index
    %0 = vector.load %arg1[%c0, %c0_0] : memref<8x16xf32, #tpu.memory_space<vmem>>, vector<8x16xf32>
    %c0_1 = arith.constant 0 : index
    %c0_2 = arith.constant 0 : index
    %1 = vector.load %arg2[%c0_1, %c0_2] : memref<16x128xf32, #tpu.memory_space<vmem>>, vector<16x128xf32>
    %cst = arith.constant dense<0.000000e+00> : vector<8x128xf32>
    %2 = tpu.matmul %0, %1, %cst {dimension_numbers = #tpu.dot_dimension_numbers<[1], [0], [0], [1], [0, 0, 1, 1], [], []>} : vector<8x16xf32>, vector<16x128xf32>, vector<8x128xf32> -> vector<8x128xf32>
    %c0_3 = arith.constant 0 : index
    %c0_4 = arith.constant 0 : index
    %3 = vector.load %arg3[%c0_3, %c0_4] : memref<1x128xf32, #tpu.memory_space<vmem>>, vector<1x128xf32>
    %4 = vector.broadcast %3 : vector<1x128xf32> to vector<8x128xf32>
    %5 = arith.addf %2, %4 : vector<8x128xf32>
    %cst_5 = arith.constant 0.000000e+00 : f32
    %6 = vector.broadcast %cst_5 : f32 to vector<8x128xf32>
    %7 = arith.maximumf %5, %6 : vector<8x128xf32>
    %c0_6 = arith.constant 0 : index
    %c0_7 = arith.constant 0 : index
    %8 = vector.load %arg4[%c0_6, %c0_7] : memref<128x128xf32, #tpu.memory_space<vmem>>, vector<128x128xf32>
    %cst_8 = arith.constant dense<0.000000e+00> : vector<8x128xf32>
    %9 = tpu.matmul %7, %8, %cst_8 {dimension_numbers = #tpu.dot_dimension_numbers<[1], [0], [0], [1], [0, 0, 1, 1], [], []>} : vector<8x128xf32>, vector<128x128xf32>, vector<8x128xf32> -> vector<8x128xf32>
    %c0_9 = arith.constant 0 : index
    %c0_10 = arith.constant 0 : index
    %10 = vector.load %arg5[%c0_9, %c0_10] : memref<1x128xf32, #tpu.memory_space<vmem>>, vector<1x128xf32>
    %11 = vector.broadcast %10 : vector<1x128xf32> to vector<8x128xf32>
    %12 = arith.addf %9, %11 : vector<8x128xf32>
    %c0_11 = arith.constant 0 : index
    %c0_12 = arith.constant 0 : index
    %13 = vector.load %arg6[%c0_11, %c0_12] : memref<8x128xf32, #tpu.memory_space<vmem>>, vector<8x128xf32>
    tpu.vector_store %arg6[%c0_11, %c0_12], %12 {strides = array<i32>} : memref<8x128xf32, #tpu.memory_space<vmem>>, vector<8x128xf32>,
    %cst_13 = arith.constant dense<0xFF800000> : vector<8xf32>
    %14 = vector.multi_reduction <maximumf>, %12, %cst_13 [1] : vector<8x128xf32> to vector<8xf32>
    %15 = vector.shape_cast %14 : vector<8xf32> to vector<8x1xf32>
    %16 = vector.broadcast %15 : vector<8x1xf32> to vector<8x128xf32>
    %17 = arith.subf %12, %16 : vector<8x128xf32>
    %18 = math.exp %17 : vector<8x128xf32>
    %cst_14 = arith.constant dense<0.000000e+00> : vector<8xf32>
    %19 = vector.multi_reduction <add>, %18, %cst_14 [1] : vector<8x128xf32> to vector<8xf32>
    %20 = vector.shape_cast %19 : vector<8xf32> to vector<8x1xf32>
    %21 = vector.broadcast %20 : vector<8x1xf32> to vector<8x128xf32>
    %22 = arith.divf %18, %21 : vector<8x128xf32>
    %23 = arith.truncf %22 : vector<8x128xf32> to vector<8x128xbf16>
    %c0_15 = arith.constant 0 : index
    %c0_16 = arith.constant 0 : index
    %24 = vector.load %arg7[%c0_15, %c0_16] : memref<8x128xbf16, #tpu.memory_space<vmem>>, vector<8x128xbf16>
    tpu.vector_store %arg7[%c0_15, %c0_16], %23 {strides = array<i32>} : memref<8x128xbf16, #tpu.memory_space<vmem>>, vector<8x128xbf16>,
    return
  }
  func.func @transform_0(%arg0: i32) -> (i32, i32) {
    %c0_i32 = arith.constant 0 : i32
    %c0_i32_0 = arith.constant 0 : i32
    return %arg0, %c0_i32 : i32, i32
  }
  func.func @transform_1(%arg0: i32) -> (i32, i32) {
    %c0_i32 = arith.constant 0 : i32
    %c0_i32_0 = arith.constant 0 : i32
    %c0_i32_1 = arith.constant 0 : i32
    return %c0_i32, %c0_i32_0 : i32, i32
  }
  func.func @transform_2(%arg0: i32) -> (i32, i32) {
    %c0_i32 = arith.constant 0 : i32
    %c0_i32_0 = arith.constant 0 : i32
    %c0_i32_1 = arith.constant 0 : i32
    return %c0_i32, %c0_i32_0 : i32, i32
  }
  func.func @transform_3(%arg0: i32) -> (i32, i32) {
    %c0_i32 = arith.constant 0 : i32
    %c0_i32_0 = arith.constant 0 : i32
    %c0_i32_1 = arith.constant 0 : i32
    return %c0_i32, %c0_i32_0 : i32, i32
  }
  func.func @transform_4(%arg0: i32) -> (i32, i32) {
    %c0_i32 = arith.constant 0 : i32
    %c0_i32_0 = arith.constant 0 : i32
    %c0_i32_1 = arith.constant 0 : i32
    return %c0_i32, %c0_i32_0 : i32, i32
  }
  func.func @transform_5(%arg0: i32) -> (i32, i32) {
    %c0_i32 = arith.constant 0 : i32
    %c0_i32_0 = arith.constant 0 : i32
    return %arg0, %c0_i32 : i32, i32
  }
  func.func @transform_6(%arg0: i32) -> (i32, i32) {
    %c0_i32 = arith.constant 0 : i32
    %c0_i32_0 = arith.constant 0 : i32
    return %arg0, %c0_i32 : i32, i32
  }
}

</mosaic_0001>

<llo_original>
// kernel: tpu_custom_call.1
$region0: #{tpu_custom_call.1}
  #allocation0 [shape = 'u32[]', space=smem, size = 0x4, offset = 0x4, fixed_abs, tag = 'smem constant byte address 0x4 - core index']
  #allocation1 [shape = 'u32[144,128]{1,0:T(1,128)}', space=vmem, size = 0x12000, scoped, tag = 'internal scratch']
  %s0 = inlined_call_operand.hbm [shape: f32[8,16], index: 0, kind: input, shape index: {}]
  %s1 = inlined_call_operand.hbm [shape: f32[16,128], index: 1, kind: input, shape index: {}]
  %s2 = inlined_call_operand.vmem [shape: f32[1,128], index: 2, kind: input, shape index: {}]
  %s3 = inlined_call_operand.hbm [shape: f32[128,128], index: 3, kind: input, shape index: {}]
  %s4 = inlined_call_operand.vmem [shape: f32[1,128], index: 4, kind: input, shape index: {}]
  %s5 = inlined_call_operand.hbm [shape: f32[8,128], index: 5, kind: output, shape index: {0}]
  %s6 = inlined_call_operand.hbm [shape: bf16[8,128], index: 6, kind: output, shape index: {1}]
  %7 = xla_tuple %s5, %s6
  %s8 = sld [smem:[#allocation0]]
  $region50: #{tpu_custom_call.1} parent=0
    _
  %s10 = ssub.s32 1, %s8
  %s11 = scalar_select 0, %s10, %s8
  $region1: #{tpu_custom_call.1} parent=0
    #allocation2 [shape = 'u8[4096]{0}', space=vmem, size = 0x1000, scoped, tag = 'input window, operand 0, single buffered']
    #allocation3 [shape = 's32[1]{0}', space=sflag, size = 0x4, scoped, tag = 'scoped memory for tpu_custom_call.1']
    #allocation4 [shape = 's32[1]{0}', space=sflag, size = 0x4, scoped, tag = 'scoped memory for tpu_custom_call.1']
    #allocation5 [shape = 'u8[8192]{0}', space=vmem, size = 0x2000, scoped, tag = 'input window, operand 1, single buffered']
    #allocation6 [shape = 's32[1]{0}', space=sflag, size = 0x4, scoped, tag = 'scoped memory for tpu_custom_call.1']
    #allocation7 [shape = 'u8[65536]{0}', space=vmem, size = 0x10000, scoped, tag = 'input window, operand 3, single buffered']
    #allocation8 [shape = 'u8[4096]{0}', space=vmem, size = 0x1000, scoped, tag = 'output window, operand 0, single buffered']
    #allocation9 [shape = 'u8[2048]{0}', space=vmem, size = 0x800, scoped, tag = 'output window, operand 1, single buffered']
    #allocation10 [shape = 's32[1]{0}', space=sflag, size = 0x4, scoped, tag = 'scoped memory for tpu_custom_call.1']
    %12 = vsyncpa [#allocation3], 0
    %13 = vsyncpa [#allocation6], 0
    %14 = vsyncpa [#allocation4], 0
    %15 = vsyncpa [#allocation10], 0
    // Predicated region
    $region2: #{tpu_custom_call.1} parent=1 // pred_check
      _
    $region3: #{tpu_custom_call.1} parent=1 // pred_check_branch
      %17 = sbr.rel (0) target = $region5
    $region4: #{tpu_custom_call.1} parent=1 // pred_region
      %s19 = ssub.s32 128, 128
      %20 = vsyncadd [#allocation3], %s19
      %s22 = sshll.u32 [#allocation2], 4
      %s23 = int_to_ptr.vmem [resolvable:$true] %s22
      %25 = dma.hbm_to_vmem [thread:$0]  %s0, 128, %s23, [#allocation3]
    $region5: #{tpu_custom_call.1} parent=1 // pred_fallthru
      _
    // Predicated region
    $region6: #{tpu_custom_call.1} parent=1 // pred_check
      _
    $region7: #{tpu_custom_call.1} parent=1 // pred_check_branch
      %27 = sbr.rel (0) target = $region9
    $region8: #{tpu_custom_call.1} parent=1 // pred_region
      %s29 = ssub.s32 256, 256
      %30 = vsyncadd [#allocation6], %s29
      %s31 = sshll.u32 [#allocation5], 4
      %s32 = int_to_ptr.vmem [resolvable:$true] %s31
      %37 = dma.hbm_to_vmem [thread:$0]  %s1, 256, %s32, [#allocation6], 128, 128, 8
    $region9: #{tpu_custom_call.1} parent=1 // pred_fallthru
      _
    // Predicated region
    $region10: #{tpu_custom_call.1} parent=1 // pred_check
      _
    $region11: #{tpu_custom_call.1} parent=1 // pred_check_branch
      %39 = sbr.rel (0) target = $region13
    $region12: #{tpu_custom_call.1} parent=1 // pred_region
      _
    $region13: #{tpu_custom_call.1} parent=1 // pred_fallthru
      _
    // Predicated region
    $region14: #{tpu_custom_call.1} parent=1 // pred_check
      _
    $region15: #{tpu_custom_call.1} parent=1 // pred_check_branch
      %41 = sbr.rel (0) target = $region17
    $region16: #{tpu_custom_call.1} parent=1 // pred_region
      %s43 = ssub.s32 2048, 2048
      %44 = vsyncadd [#allocation6], %s43
      %s45 = sshll.u32 [#allocation7], 4
      %s46 = int_to_ptr.vmem [resolvable:$true] %s45
      %51 = dma.hbm_to_vmem [thread:$0]  %s3, 2048, %s46, [#allocation6], 128, 128, 8
    $region17: #{tpu_custom_call.1} parent=1 // pred_fallthru
      _
    // Predicated region
    $region18: #{tpu_custom_call.1} parent=1 // pred_check
      _
    $region19: #{tpu_custom_call.1} parent=1 // pred_check_branch
      %53 = sbr.rel (0) target = $region21
    $region20: #{tpu_custom_call.1} parent=1 // pred_region
      _
    $region21: #{tpu_custom_call.1} parent=1 // pred_fallthru
      _
    // Predicated region
    $region22: #{tpu_custom_call.1} parent=1 // pred_check
      _
    $region23: #{tpu_custom_call.1} parent=1 // pred_check_branch
      %55 = sbr.rel (0) target = $region25
    $region24: #{tpu_custom_call.1} parent=1 // pred_region
      %56 = dma.done [#allocation3], 128
    $region25: #{tpu_custom_call.1} parent=1 // pred_fallthru
      _
    // Predicated region
    $region26: #{tpu_custom_call.1} parent=1 // pred_check
      _
    $region27: #{tpu_custom_call.1} parent=1 // pred_check_branch
      %58 = sbr.rel (0) target = $region29
    $region28: #{tpu_custom_call.1} parent=1 // pred_region
      %59 = dma.done [#allocation6], 256
    $region29: #{tpu_custom_call.1} parent=1 // pred_fallthru
      _
    // Predicated region
    $region30: #{tpu_custom_call.1} parent=1 // pred_check
      _
    $region31: #{tpu_custom_call.1} parent=1 // pred_check_branch
      %61 = sbr.rel (0) target = $region33
    $region32: #{tpu_custom_call.1} parent=1 // pred_region
      %62 = dma.done [#allocation6], 2048
    $region33: #{tpu_custom_call.1} parent=1 // pred_fallthru
      _
    %v63 = vld [vmem:[#allocation2] sm:$0xff]
    %v64 = vld [vmem:[#allocation5] sm:$0xff]
    %v65 = vld [vmem:[#allocation5 + $0x8] sm:$0xff]
    %v66 = vld [vmem:[%s2] sm:$0x1]
    %v68 = vlaneseq
    %v69 = vshrl.u32 %v68, 7
    %v70 = vsub.s32 0, %v69
    %v71 = vrot.slane %v66, %v70
    %vm73 = vcmask 130048
    %v75 = vsel %vm73, %v63, 0
    %77 = vmatprep.subr.mxu0 0.0
    %78 = vmatpush1.msra.mxu0 0.0
    %79 = vmatprep.subr.mxu0 0.0
    %80 = vmatpush1.msra.mxu0 0.0
    %81 = vmatprep.subr.mxu0 0.0
    %82 = vmatpush1.msra.mxu0 0.0
    %83 = vmatprep.subr.mxu0 0.0
    %84 = vmatpush1.msra.mxu0 0.0
    %85 = vmatprep.subr.mxu0 0.0
    %86 = vmatpush1.msra.mxu0 0.0
    %87 = vmatprep.subr.mxu0 0.0
    %88 = vmatpush1.msra.mxu0 0.0
    %89 = vmatprep.subr.mxu0 0.0
    %90 = vmatpush1.msra.mxu0 0.0
    %91 = vmatprep.subr.mxu0 0.0
    %92 = vmatpush1.msra.mxu0 0.0
    %93 = vmatprep.subr.mxu0 0.0
    %94 = vmatpush1.msra.mxu0 0.0
    %95 = vmatprep.subr.mxu0 0.0
    %96 = vmatpush1.msra.mxu0 0.0
    %97 = vmatprep.subr.mxu0 0.0
    %98 = vmatpush1.msra.mxu0 0.0
    %99 = vmatprep.subr.mxu0 0.0
    %100 = vmatpush1.msra.mxu0 0.0
    %101 = vmatprep.subr.mxu0 0.0
    %102 = vmatpush1.msra.mxu0 0.0
    %103 = vmatprep.subr.mxu0 0.0
    %104 = vmatpush1.msra.mxu0 0.0
    %105 = vmatprep.subr.mxu0 0.0
    %106 = vmatpush1.msra.mxu0 %v65
    %107 = vmatprep.subr.mxu0 0.0
    %108 = vmatpush1.msra.mxu0 %v64
    %109 = vmatprep.subr.mxu0 0.0
    %110 = vmatpush2.msra.mxu0 0.0
    %111 = vmatprep.subr.mxu0 0.0
    %112 = vmatpush2.msra.mxu0 0.0
    %113 = vmatprep.subr.mxu0 0.0
    %114 = vmatpush2.msra.mxu0 0.0
    %115 = vmatprep.subr.mxu0 0.0
    %116 = vmatpush2.msra.mxu0 0.0
    %117 = vmatprep.subr.mxu0 0.0
    %118 = vmatpush2.msra.mxu0 0.0
    %119 = vmatprep.subr.mxu0 0.0
    %120 = vmatpush2.msra.mxu0 0.0
    %121 = vmatprep.subr.mxu0 0.0
    %122 = vmatpush2.msra.mxu0 0.0
    %123 = vmatprep.subr.mxu0 0.0
    %124 = vmatpush2.msra.mxu0 0.0
    %125 = vmatprep.subr.mxu0 0.0
    %126 = vmatpush2.msra.mxu0 0.0
    %127 = vmatprep.subr.mxu0 0.0
    %128 = vmatpush2.msra.mxu0 0.0
    %129 = vmatprep.subr.mxu0 0.0
    %130 = vmatpush2.msra.mxu0 0.0
    %131 = vmatprep.subr.mxu0 0.0
    %132 = vmatpush2.msra.mxu0 0.0
    %133 = vmatprep.subr.mxu0 0.0
    %134 = vmatpush2.msra.mxu0 0.0
    %135 = vmatprep.subr.mxu0 0.0
    %136 = vmatpush2.msra.mxu0 0.0
    %137 = vmatprep.subr.mxu0 0.0
    %138 = vmatpush2.msra.mxu0 0.0
    %139 = vmatprep.subr.mxu0 0.0
    %140 = vmatpush2.msra.mxu0 0.0
    %141 = vmatprep.mubr.f32.mxu0 0.0
    %142 = vmatmul.mubr.f32.gmra.mxu0 %v75
    %v143 = vpop.f32.mrf.mxu0
    %v144 = vadd.f32 %v71, %v143
    %v145 = vpop.f32.mrf.mxu0
    %146 = vdwg.mxu0
    %v147 = vmax.f32 %v144, 0.0
    %v148 = vld [vmem:[#allocation7] sm:$0xff]
    %v149 = vld [vmem:[#allocation7 + $0x8] sm:$0xff]
    %v150 = vld [vmem:[#allocation7 + $0x10] sm:$0xff]
    %v151 = vld [vmem:[#allocation7 + $0x18] sm:$0xff]
    %v152 = vld [vmem:[#allocation7 + $0x20] sm:$0xff]
    %v153 = vld [vmem:[#allocation7 + $0x28] sm:$0xff]
    %v154 = vld [vmem:[#allocation7 + $0x30] sm:$0xff]
    %v155 = vld [vmem:[#allocation7 + $0x38] sm:$0xff]
    %v156 = vld [vmem:[#allocation7 + $0x40] sm:$0xff]
    %v157 = vld [vmem:[#allocation7 + $0x48] sm:$0xff]
    %v158 = vld [vmem:[#allocation7 + $0x50] sm:$0xff]
    %v159 = vld [vmem:[#allocation7 + $0x58] sm:$0xff]
    %v160 = vld [vmem:[#allocation7 + $0x60] sm:$0xff]
    %v161 = vld [vmem:[#allocation7 + $0x68] sm:$0xff]
    %v162 = vld [vmem:[#allocation7 + $0x70] sm:$0xff]
    %v163 = vld [vmem:[#allocation7 + $0x78] sm:$0xff]
    %v164 = vld [vmem:[%s4] sm:$0x1]
    %v166 = vlaneseq
    %v167 = vshrl.u32 %v166, 7
    %v168 = vsub.s32 0, %v167
    %v169 = vrot.slane %v164, %v168
    %171 = vmatprep.subr.mxu0 0.0
    %172 = vmatpush1.msra.mxu0 %v163
    %173 = vmatprep.subr.mxu0 0.0
    %174 = vmatpush1.msra.mxu0 %v162
    %175 = vmatprep.subr.mxu0 0.0
    %176 = vmatpush1.msra.mxu0 %v161
    %177 = vmatprep.subr.mxu0 0.0
    %178 = vmatpush1.msra.mxu0 %v160
    %179 = vmatprep.subr.mxu0 0.0
    %180 = vmatpush1.msra.mxu0 %v159
    %181 = vmatprep.subr.mxu0 0.0
    %182 = vmatpush1.msra.mxu0 %v158
    %183 = vmatprep.subr.mxu0 0.0
    %184 = vmatpush1.msra.mxu0 %v157
    %185 = vmatprep.subr.mxu0 0.0
    %186 = vmatpush1.msra.mxu0 %v156
    %187 = vmatprep.subr.mxu0 0.0
    %188 = vmatpush1.msra.mxu0 %v155
    %189 = vmatprep.subr.mxu0 0.0
    %190 = vmatpush1.msra.mxu0 %v154
    %191 = vmatprep.subr.mxu0 0.0
    %192 = vmatpush1.msra.mxu0 %v153
    %193 = vmatprep.subr.mxu0 0.0
    %194 = vmatpush1.msra.mxu0 %v152
    %195 = vmatprep.subr.mxu0 0.0
    %196 = vmatpush1.msra.mxu0 %v151
    %197 = vmatprep.subr.mxu0 0.0
    %198 = vmatpush1.msra.mxu0 %v150
    %199 = vmatprep.subr.mxu0 0.0
    %200 = vmatpush1.msra.mxu0 %v149
    %201 = vmatprep.subr.mxu0 0.0
    %202 = vmatpush1.msra.mxu0 %v148
    %203 = vmatprep.subr.mxu0 0.0
    %204 = vmatpush2.msra.mxu0 0.0
    %205 = vmatprep.subr.mxu0 0.0
    %206 = vmatpush2.msra.mxu0 0.0
    %207 = vmatprep.subr.mxu0 0.0
    %208 = vmatpush2.msra.mxu0 0.0
    %209 = vmatprep.subr.mxu0 0.0
    %210 = vmatpush2.msra.mxu0 0.0
    %211 = vmatprep.subr.mxu0 0.0
    %212 = vmatpush2.msra.mxu0 0.0
    %213 = vmatprep.subr.mxu0 0.0
    %214 = vmatpush2.msra.mxu0 0.0
    %215 = vmatprep.subr.mxu0 0.0
    %216 = vmatpush2.msra.mxu0 0.0
    %217 = vmatprep.subr.mxu0 0.0
    %218 = vmatpush2.msra.mxu0 0.0
    %219 = vmatprep.subr.mxu0 0.0
    %220 = vmatpush2.msra.mxu0 0.0
    %221 = vmatprep.subr.mxu0 0.0
    %222 = vmatpush2.msra.mxu0 0.0
    %223 = vmatprep.subr.mxu0 0.0
    %224 = vmatpush2.msra.mxu0 0.0
    %225 = vmatprep.subr.mxu0 0.0
    %226 = vmatpush2.msra.mxu0 0.0
    %227 = vmatprep.subr.mxu0 0.0
    %228 = vmatpush2.msra.mxu0 0.0
    %229 = vmatprep.subr.mxu0 0.0
    %230 = vmatpush2.msra.mxu0 0.0
    %231 = vmatprep.subr.mxu0 0.0
    %232 = vmatpush2.msra.mxu0 0.0
    %233 = vmatprep.subr.mxu0 0.0
    %234 = vmatpush2.msra.mxu0 0.0
    %235 = vmatprep.mubr.f32.mxu0 0.0
    %236 = vmatmul.mubr.f32.gmra.mxu0 %v147
    %v237 = vpop.f32.mrf.mxu0
    %v238 = vadd.f32 %v169, %v237
    %v239 = vpop.f32.mrf.mxu0
    %240 = vdwg.mxu0
    %241 = vst [vmem:[#allocation8] sm:$0xff] %v238
    %242 = vmax.xlane.f32.xlu0 %v238
    %v243 = vpop.xlane.xlu0 %242
    %v244 = vsub.f32 %v238, %v243
    %v245 = vmul.f32 %v244, 1.442695
    %v246 = vpow.pop %v245
    %247 = vadd.xlane.f32.xlu0 %v246
    %v248 = vpop.xlane.xlu0 %247
    %v249 = vrcp.pop %v248
    %v250 = vmul.f32 %v246, %v249
    %v251 = vpack.c.bf16 %v250, %v250
    %252 = vst [vmem:[#allocation9] sm:$0xf] %v251
    // Predicated region
    $region34: #{tpu_custom_call.1} parent=1 // pred_check
      _
    $region35: #{tpu_custom_call.1} parent=1 // pred_check_branch
      %254 = sbr.rel (0) target = $region37
    $region36: #{tpu_custom_call.1} parent=1 // pred_region
      %s256 = ssub.s32 128, 128
      %257 = vsyncadd [#allocation4], %s256
      %s259 = sshll.u32 [#allocation8], 4
      %s260 = int_to_ptr.vmem [resolvable:$true] %s259
      %262 = dma.vmem_to_hbm [thread:$0]  %s260, 128, %s5, [#allocation4]
    $region37: #{tpu_custom_call.1} parent=1 // pred_fallthru
      _
    // Predicated region
    $region38: #{tpu_custom_call.1} parent=1 // pred_check
      _
    $region39: #{tpu_custom_call.1} parent=1 // pred_check_branch
      %264 = sbr.rel (0) target = $region41
    $region40: #{tpu_custom_call.1} parent=1 // pred_region
      %s266 = ssub.s32 64, 64
      %267 = vsyncadd [#allocation10], %s266
      %s269 = sshll.u32 [#allocation9], 4
      %s270 = int_to_ptr.vmem [resolvable:$true] %s269
      %272 = dma.vmem_to_hbm [thread:$0]  %s270, 64, %s6, [#allocation10]
    $region41: #{tpu_custom_call.1} parent=1 // pred_fallthru
      _
    // Predicated region
    $region42: #{tpu_custom_call.1} parent=1 // pred_check
      _
    $region43: #{tpu_custom_call.1} parent=1 // pred_check_branch
      %274 = sbr.rel (0) target = $region45
    $region44: #{tpu_custom_call.1} parent=1 // pred_region
      %275 = dma.done [#allocation4], 128
    $region45: #{tpu_custom_call.1} parent=1 // pred_fallthru
      _
    // Predicated region
    $region46: #{tpu_custom_call.1} parent=1 // pred_check
      _
    $region47: #{tpu_custom_call.1} parent=1 // pred_check_branch
      %277 = sbr.rel (0) target = $region49
    $region48: #{tpu_custom_call.1} parent=1 // pred_region
      %278 = dma.done [#allocation10], 64
    $region49: #{tpu_custom_call.1} parent=1 // pred_fallthru
      _
    %279 = vsyncpa [#allocation3], 1
    %280 = vsyncpa [#allocation6], 1
    %281 = vsyncpa [#allocation4], 1
    %282 = vsyncpa [#allocation10], 1

</llo_original>
